<compile_context>
chip_gen: v7x
topology: tpu7x:2x2x1
jax: 0.10.0
libtpu: 0.0.40
codegen_flags: <defaults>
</compile_context>

<pallas_src>
import functools

import jax
import jax.numpy as jnp
from jax.experimental import pallas as pl
from jax.experimental.pallas import tpu as pltpu


def _double_conv_kernel(x_ref, t1_ref, b1_ref, t2_ref, b2_ref, o_ref, *, H, TH):
    # x_ref : (1, 1, TH+4, W*Cin)   bf16  input row tile, 2-row halo each side
    # t1_ref: (3, W*Cin, W*Cmid)    bf16  conv1 block-banded weights (BN1 folded)
    # b1_ref: (1, W*Cmid)           f32   BN1 folded bias (tiled over W)
    # t2_ref: (3, W*Cmid, W*Cout)   bf16  conv2 block-banded weights (BN2 folded)
    # b2_ref: (1, W*Cout)           f32   BN2 folded bias (tiled over W)
    # o_ref : (1, 1, TH, W*Cout)    f32   lane-dense output row tile
    t = pl.program_id(1)
    x = x_ref[0, 0]                                        # (TH+4, W*Cin)

    # ---- conv1 + BN1 + ReLU: TH+2 intermediate rows (1-row halo for conv2) ----
    acc1 = jnp.dot(x[0:TH + 2], t1_ref[0], preferred_element_type=jnp.float32)
    acc1 = acc1 + jnp.dot(x[1:TH + 3], t1_ref[1], preferred_element_type=jnp.float32)
    acc1 = acc1 + jnp.dot(x[2:TH + 4], t1_ref[2], preferred_element_type=jnp.float32)
    y1 = jnp.maximum(acc1 + b1_ref[...], 0.0)              # (TH+2, W*Cmid) f32

    # Intermediate rows that fall outside the image (the "same"-padding ring
    # between the two convs) must be exactly zero.
    row = jax.lax.broadcasted_iota(jnp.int32, (TH + 2, 1), 0) + (t * TH - 1)
    y1 = jnp.where(jnp.logical_and(row >= 0, row < H), y1, 0.0)
    y1b = y1.astype(jnp.bfloat16)

    # ---- conv2 + BN2 + ReLU ----
    acc2 = jnp.dot(y1b[0:TH], t2_ref[0], preferred_element_type=jnp.float32)
    acc2 = acc2 + jnp.dot(y1b[1:TH + 1], t2_ref[1], preferred_element_type=jnp.float32)
    acc2 = acc2 + jnp.dot(y1b[2:TH + 2], t2_ref[2], preferred_element_type=jnp.float32)
    o_ref[0, 0] = jnp.maximum(acc2 + b2_ref[...], 0.0)     # dense (TH, W*Cout) store


def _banded_weights(w_hwio, W):
    """(3, 3, Ci, Co) HWIO kernel -> (3, W*Ci, W*Co) block-banded matrices.

    T[dh, wi*Ci + ci, wo*Co + co] = w[dh, dw, ci, co] with wi = wo + dw - 1 and
    no entry (zero) when wi falls outside [0, W): this absorbs the 'same'
    zero-padding along W into the matmul itself.
    """
    Ci, Co = w_hwio.shape[2], w_hwio.shape[3]
    shift = jnp.stack(
        [jnp.eye(W, W, k=1 - dw, dtype=w_hwio.dtype) for dw in range(3)])   # (3, W, W)
    t = jnp.einsum("xio,hxcm->hicom", shift, w_hwio)                        # (3, W, Ci, W, Co)
    return t.reshape(3, W * Ci, W * Co)


def double_conv(x_nchw, params, eps=1e-5, row_tile=8):
    """Pallas implementation of DoubleConv.forward (eval-mode BN). NCHW in/out."""
    (w1, g1, be1, m1, v1, w2, g2, be2, m2, v2) = params
    N, Cin, H, W = x_nchw.shape
    Cmid = w1.shape[0]
    Cout = w2.shape[0]
    TH = row_tile if (H % row_tile == 0) else H
    nT = H // TH

    # Fold eval-mode BatchNorm into a per-output-channel scale (-> weights) + bias.
    s1 = g1 / jnp.sqrt(v1 + eps)
    s2 = g2 / jnp.sqrt(v2 + eps)
    w1s = jnp.transpose(w1, (2, 3, 1, 0)) * s1          # OIHW -> HWIO, scaled over O
    w2s = jnp.transpose(w2, (2, 3, 1, 0)) * s2
    t1 = _banded_weights(w1s, W).astype(jnp.bfloat16)   # (3, W*Cin,  W*Cmid)
    t2 = _banded_weights(w2s, W).astype(jnp.bfloat16)   # (3, W*Cmid, W*Cout)
    b1 = jnp.tile(be1 - m1 * s1, W).reshape(1, W * Cmid).astype(jnp.float32)
    b2 = jnp.tile(be2 - m2 * s2, W).reshape(1, W * Cout).astype(jnp.float32)

    # NCHW -> lane-dense (N, H, W*Cin) bf16 slab, zero-padded by 2 rows per side
    # (the W-direction padding of both convs is absorbed into t1/t2).
    x_slab = jnp.transpose(x_nchw, (0, 2, 3, 1)).astype(jnp.bfloat16).reshape(N, H, W * Cin)
    x_pad = jnp.pad(x_slab, ((0, 0), (2, 2), (0, 0)))
    # Overlapping row tiles with a 2-row halo on each side.
    x_tiles = jnp.stack(
        [x_pad[:, i * TH:i * TH + TH + 4, :] for i in range(nT)], axis=1)   # (N,nT,TH+4,W*Cin)

    kernel = functools.partial(_double_conv_kernel, H=H, TH=TH)
    out_tiled = pl.pallas_call(
        kernel,
        out_shape=jax.ShapeDtypeStruct((N, nT, TH, W * Cout), jnp.float32),
        grid_spec=pltpu.PrefetchScalarGridSpec(
            num_scalar_prefetch=0,
            grid=(N, nT),
            in_specs=[
                pl.BlockSpec((1, 1, TH + 4, W * Cin), lambda n, i: (n, i, 0, 0)),
                pl.BlockSpec((3, W * Cin, W * Cmid), lambda n, i: (0, 0, 0)),
                pl.BlockSpec((1, W * Cmid), lambda n, i: (0, 0)),
                pl.BlockSpec((3, W * Cmid, W * Cout), lambda n, i: (0, 0, 0)),
                pl.BlockSpec((1, W * Cout), lambda n, i: (0, 0)),
            ],
            out_specs=pl.BlockSpec((1, 1, TH, W * Cout), lambda n, i: (n, i, 0, 0)),
        ),
        compiler_params=pltpu.CompilerParams(
            dimension_semantics=("parallel", "parallel"),
            vmem_limit_bytes=32 * 1024 * 1024,
        ),
    )(x_tiles, t1, b1, t2, b2)

    out_nhwc = out_tiled.reshape(N, H, W, Cout)
    return jnp.transpose(out_nhwc, (0, 3, 1, 2))   # back to NCHW


def double_conv_reference(x_nchw, params, eps=1e-5):
    """Plain-JAX f32 reference (mirrors PyTorch eval-mode semantics)."""
    (w1, g1, be1, m1, v1, w2, g2, be2, m2, v2) = params

    def conv(x, w):  # x NCHW, w OIHW
        return jax.lax.conv_general_dilated(
            x, w, window_strides=(1, 1), padding="SAME",
            dimension_numbers=("NCHW", "OIHW", "NCHW"))

    def bn(x, g, b, m, v):
        c = lambda a: a[None, :, None, None]
        return (x - c(m)) / jnp.sqrt(c(v) + eps) * c(g) + c(b)

    y = jax.nn.relu(bn(conv(x_nchw, w1), g1, be1, m1, v1))
    y = jax.nn.relu(bn(conv(y, w2), g2, be2, m2, v2))
    return y


def init_params(key, in_channels, out_channels):
    ks = jax.random.split(key, 10)
    w1 = 0.2 * jax.random.normal(ks[0], (out_channels, in_channels, 3, 3), jnp.float32)
    g1 = 0.5 + jax.random.uniform(ks[1], (out_channels,), jnp.float32)
    be1 = 0.1 * jax.random.normal(ks[2], (out_channels,), jnp.float32)
    m1 = 0.1 * jax.random.normal(ks[3], (out_channels,), jnp.float32)
    v1 = 0.5 + jax.random.uniform(ks[4], (out_channels,), jnp.float32)
    w2 = 0.2 * jax.random.normal(ks[5], (out_channels, out_channels, 3, 3), jnp.float32)
    g2 = 0.5 + jax.random.uniform(ks[6], (out_channels,), jnp.float32)
    be2 = 0.1 * jax.random.normal(ks[7], (out_channels,), jnp.float32)
    m2 = 0.1 * jax.random.normal(ks[8], (out_channels,), jnp.float32)
    v2 = 0.5 + jax.random.uniform(ks[9], (out_channels,), jnp.float32)
    return (w1, g1, be1, m1, v1, w2, g2, be2, m2, v2)


if __name__ == "__main__":
    key = jax.random.PRNGKey(0)
    k_x, k_p = jax.random.split(key)

    N, Cin, Cout, H, W = 2, 4, 8, 16, 16
    x = jax.random.normal(k_x, (N, Cin, H, W), jnp.float32)   # NCHW, like PyTorch
    params = init_params(k_p, Cin, Cout)

    out = jax.block_until_ready(jax.jit(double_conv)(x, params))
    ref = jax.block_until_ready(double_conv_reference(x, params))

    assert out.shape == (N, Cout, H, W), out.shape
    # Tolerance loosened vs. the pure-f32 version because conv operands are bf16
    # (accumulation, bias add and ReLU remain f32), as anticipated in the review.
    assert jnp.allclose(out, ref, rtol=5e-2, atol=2e-1), \
        float(jnp.max(jnp.abs(out - ref)))
    print("KERNEL_OK")
</pallas_src>

<mosaic_0001>
module attributes {stable_mosaic.version = 11 : i64} {
  func.func @_double_conv_kernel(%arg0: i32, %arg1: i32, %arg2: memref<1x1x12x64xbf16, #tpu.memory_space<vmem>>, %arg3: memref<3x64x128xbf16, #tpu.memory_space<vmem>>, %arg4: memref<1x128xf32, #tpu.memory_space<vmem>>, %arg5: memref<3x128x128xbf16, #tpu.memory_space<vmem>>, %arg6: memref<1x128xf32, #tpu.memory_space<vmem>>, %arg7: memref<1x1x8x128xf32, #tpu.memory_space<vmem>>) attributes {dimension_semantics = [#tpu.dimension_semantics<parallel>, #tpu.dimension_semantics<parallel>], iteration_bounds = array<i64: 2, 2>, scalar_prefetch = 0 : i64, scratch_operands = 0 : i64, tpu.core_type = #tpu.core_type<tc>, window_params = [{transform_indices = @transform_0, window_bounds = array<i64: 1, 1, 12, 64>}, {pipeline_mode = #tpu.pipeline_mode<synchronous>, transform_indices = @transform_1, window_bounds = array<i64: 3, 64, 128>}, {pipeline_mode = #tpu.pipeline_mode<synchronous>, transform_indices = @transform_2, window_bounds = array<i64: 1, 128>}, {pipeline_mode = #tpu.pipeline_mode<synchronous>, transform_indices = @transform_3, window_bounds = array<i64: 3, 128, 128>}, {pipeline_mode = #tpu.pipeline_mode<synchronous>, transform_indices = @transform_4, window_bounds = array<i64: 1, 128>}, {transform_indices = @transform_5, window_bounds = array<i64: 1, 1, 8, 128>}]} {
    %c0 = arith.constant 0 : index
    %c0_0 = arith.constant 0 : index
    %c0_1 = arith.constant 0 : index
    %c0_2 = arith.constant 0 : index
    %0 = vector.load %arg2[%c0, %c0_0, %c0_1, %c0_2] : memref<1x1x12x64xbf16, #tpu.memory_space<vmem>>, vector<1x1x12x64xbf16>
    %1 = vector.shape_cast %0 : vector<1x1x12x64xbf16> to vector<12x64xbf16>
    %2 = vector.extract_strided_slice %1 {offsets = [0, 0], sizes = [10, 64], strides = [1, 1]} : vector<12x64xbf16> to vector<10x64xbf16>
    %c0_3 = arith.constant 0 : index
    %c0_4 = arith.constant 0 : index
    %c0_5 = arith.constant 0 : index
    %3 = vector.load %arg3[%c0_3, %c0_4, %c0_5] : memref<3x64x128xbf16, #tpu.memory_space<vmem>>, vector<1x64x128xbf16>
    %4 = vector.shape_cast %3 : vector<1x64x128xbf16> to vector<64x128xbf16>
    %cst = arith.constant dense<0.000000e+00> : vector<10x128xf32>
    %5 = tpu.matmul %2, %4, %cst {dimension_numbers = #tpu.dot_dimension_numbers<[1], [0], [0], [1], [0, 0, 1, 1], [], []>} : vector<10x64xbf16>, vector<64x128xbf16>, vector<10x128xf32> -> vector<10x128xf32>
    %6 = vector.extract_strided_slice %1 {offsets = [1, 0], sizes = [10, 64], strides = [1, 1]} : vector<12x64xbf16> to vector<10x64xbf16>
    %c1 = arith.constant 1 : index
    %c0_6 = arith.constant 0 : index
    %c0_7 = arith.constant 0 : index
    %7 = vector.load %arg3[%c1, %c0_6, %c0_7] : memref<3x64x128xbf16, #tpu.memory_space<vmem>>, vector<1x64x128xbf16>
    %8 = vector.shape_cast %7 : vector<1x64x128xbf16> to vector<64x128xbf16>
    %cst_8 = arith.constant dense<0.000000e+00> : vector<10x128xf32>
    %9 = tpu.matmul %6, %8, %cst_8 {dimension_numbers = #tpu.dot_dimension_numbers<[1], [0], [0], [1], [0, 0, 1, 1], [], []>} : vector<10x64xbf16>, vector<64x128xbf16>, vector<10x128xf32> -> vector<10x128xf32>
    %10 = arith.addf %5, %9 : vector<10x128xf32>
    %11 = vector.extract_strided_slice %1 {offsets = [2, 0], sizes = [10, 64], strides = [1, 1]} : vector<12x64xbf16> to vector<10x64xbf16>
    %c2 = arith.constant 2 : index
    %c0_9 = arith.constant 0 : index
    %c0_10 = arith.constant 0 : index
    %12 = vector.load %arg3[%c2, %c0_9, %c0_10] : memref<3x64x128xbf16, #tpu.memory_space<vmem>>, vector<1x64x128xbf16>
    %13 = vector.shape_cast %12 : vector<1x64x128xbf16> to vector<64x128xbf16>
    %cst_11 = arith.constant dense<0.000000e+00> : vector<10x128xf32>
    %14 = tpu.matmul %11, %13, %cst_11 {dimension_numbers = #tpu.dot_dimension_numbers<[1], [0], [0], [1], [0, 0, 1, 1], [], []>} : vector<10x64xbf16>, vector<64x128xbf16>, vector<10x128xf32> -> vector<10x128xf32>
    %15 = arith.addf %10, %14 : vector<10x128xf32>
    %c0_12 = arith.constant 0 : index
    %c0_13 = arith.constant 0 : index
    %16 = vector.load %arg4[%c0_12, %c0_13] : memref<1x128xf32, #tpu.memory_space<vmem>>, vector<1x128xf32>
    %17 = vector.broadcast %16 : vector<1x128xf32> to vector<10x128xf32>
    %18 = arith.addf %15, %17 : vector<10x128xf32>
    %cst_14 = arith.constant 0.000000e+00 : f32
    %19 = vector.broadcast %cst_14 : f32 to vector<10x128xf32>
    %20 = arith.maximumf %18, %19 : vector<10x128xf32>
    %21 = tpu.iota {dimensions = array<i32: 0>} : vector<10x1xi32>
    %c8_i32 = arith.constant 8 : i32
    %22 = arith.muli %arg1, %c8_i32 : i32
    %c1_i32 = arith.constant 1 : i32
    %23 = arith.subi %22, %c1_i32 : i32
    %24 = vector.broadcast %23 : i32 to vector<10x1xi32>
    %25 = arith.addi %21, %24 : vector<10x1xi32>
    %c0_i32 = arith.constant 0 : i32
    %26 = vector.broadcast %c0_i32 : i32 to vector<10x1xi32>
    %27 = arith.cmpi sge, %25, %26 : vector<10x1xi32>
    %c16_i32 = arith.constant 16 : i32
    %28 = vector.broadcast %c16_i32 : i32 to vector<10x1xi32>
    %29 = arith.cmpi slt, %25, %28 : vector<10x1xi32>
    %30 = arith.andi %27, %29 : vector<10x1xi1>
    %cst_15 = arith.constant 0.000000e+00 : f32
    %31 = vector.shape_cast %30 : vector<10x1xi1> to vector<10x1xi1>
    %32 = vector.broadcast %31 : vector<10x1xi1> to vector<10x128xi1>
    %33 = vector.broadcast %cst_15 : f32 to vector<10x128xf32>
    %34 = arith.select %32, %20, %33 : vector<10x128xi1>, vector<10x128xf32>
    %35 = arith.truncf %34 : vector<10x128xf32> to vector<10x128xbf16>
    %36 = vector.extract_strided_slice %35 {offsets = [0, 0], sizes = [8, 128], strides = [1, 1]} : vector<10x128xbf16> to vector<8x128xbf16>
    %c0_16 = arith.constant 0 : index
    %c0_17 = arith.constant 0 : index
    %c0_18 = arith.constant 0 : index
    %37 = vector.load %arg5[%c0_16, %c0_17, %c0_18] : memref<3x128x128xbf16, #tpu.memory_space<vmem>>, vector<1x128x128xbf16>
    %38 = vector.shape_cast %37 : vector<1x128x128xbf16> to vector<128x128xbf16>
    %cst_19 = arith.constant dense<0.000000e+00> : vector<8x128xf32>
    %39 = tpu.matmul %36, %38, %cst_19 {dimension_numbers = #tpu.dot_dimension_numbers<[1], [0], [0], [1], [0, 0, 1, 1], [], []>} : vector<8x128xbf16>, vector<128x128xbf16>, vector<8x128xf32> -> vector<8x128xf32>
    %40 = vector.extract_strided_slice %35 {offsets = [1, 0], sizes = [8, 128], strides = [1, 1]} : vector<10x128xbf16> to vector<8x128xbf16>
    %c1_20 = arith.constant 1 : index
    %c0_21 = arith.constant 0 : index
    %c0_22 = arith.constant 0 : index
    %41 = vector.load %arg5[%c1_20, %c0_21, %c0_22] : memref<3x128x128xbf16, #tpu.memory_space<vmem>>, vector<1x128x128xbf16>
    %42 = vector.shape_cast %41 : vector<1x128x128xbf16> to vector<128x128xbf16>
    %cst_23 = arith.constant dense<0.000000e+00> : vector<8x128xf32>
    %43 = tpu.matmul %40, %42, %cst_23 {dimension_numbers = #tpu.dot_dimension_numbers<[1], [0], [0], [1], [0, 0, 1, 1], [], []>} : vector<8x128xbf16>, vector<128x128xbf16>, vector<8x128xf32> -> vector<8x128xf32>
    %44 = arith.addf %39, %43 : vector<8x128xf32>
    %45 = vector.extract_strided_slice %35 {offsets = [2, 0], sizes = [8, 128], strides = [1, 1]} : vector<10x128xbf16> to vector<8x128xbf16>
    %c2_24 = arith.constant 2 : index
    %c0_25 = arith.constant 0 : index
    %c0_26 = arith.constant 0 : index
    %46 = vector.load %arg5[%c2_24, %c0_25, %c0_26] : memref<3x128x128xbf16, #tpu.memory_space<vmem>>, vector<1x128x128xbf16>
    %47 = vector.shape_cast %46 : vector<1x128x128xbf16> to vector<128x128xbf16>
    %cst_27 = arith.constant dense<0.000000e+00> : vector<8x128xf32>
    %48 = tpu.matmul %45, %47, %cst_27 {dimension_numbers = #tpu.dot_dimension_numbers<[1], [0], [0], [1], [0, 0, 1, 1], [], []>} : vector<8x128xbf16>, vector<128x128xbf16>, vector<8x128xf32> -> vector<8x128xf32>
    %49 = arith.addf %44, %48 : vector<8x128xf32>
    %c0_28 = arith.constant 0 : index
    %c0_29 = arith.constant 0 : index
    %50 = vector.load %arg6[%c0_28, %c0_29] : memref<1x128xf32, #tpu.memory_space<vmem>>, vector<1x128xf32>
    %51 = vector.broadcast %50 : vector<1x128xf32> to vector<8x128xf32>
    %52 = arith.addf %49, %51 : vector<8x128xf32>
    %cst_30 = arith.constant 0.000000e+00 : f32
    %53 = vector.broadcast %cst_30 : f32 to vector<8x128xf32>
    %54 = arith.maximumf %52, %53 : vector<8x128xf32>
    %c0_31 = arith.constant 0 : index
    %c0_32 = arith.constant 0 : index
    %c0_33 = arith.constant 0 : index
    %c0_34 = arith.constant 0 : index
    %55 = vector.load %arg7[%c0_31, %c0_32, %c0_33, %c0_34] : memref<1x1x8x128xf32, #tpu.memory_space<vmem>>, vector<1x1x8x128xf32>
    %56 = vector.shape_cast %55 : vector<1x1x8x128xf32> to vector<8x128xf32>
    %57 = vector.shape_cast %54 : vector<8x128xf32> to vector<1x1x8x128xf32>
    tpu.vector_store %arg7[%c0_31, %c0_32, %c0_33, %c0_34], %57 {strides = array<i32>} : memref<1x1x8x128xf32, #tpu.memory_space<vmem>>, vector<1x1x8x128xf32>,
    return
  }
  func.func @transform_0(%arg0: i32, %arg1: i32) -> (i32, i32, i32, i32) {
    %c0_i32 = arith.constant 0 : i32
    %c0_i32_0 = arith.constant 0 : i32
    %c0_i32_1 = arith.constant 0 : i32
    return %arg0, %arg1, %c0_i32, %c0_i32_0 : i32, i32, i32, i32
  }
  func.func @transform_1(%arg0: i32, %arg1: i32) -> (i32, i32, i32) {
    %c0_i32 = arith.constant 0 : i32
    %c0_i32_0 = arith.constant 0 : i32
    %c0_i32_1 = arith.constant 0 : i32
    %c0_i32_2 = arith.constant 0 : i32
    return %c0_i32, %c0_i32_0, %c0_i32_1 : i32, i32, i32
  }
  func.func @transform_2(%arg0: i32, %arg1: i32) -> (i32, i32) {
    %c0_i32 = arith.constant 0 : i32
    %c0_i32_0 = arith.constant 0 : i32
    %c0_i32_1 = arith.constant 0 : i32
    return %c0_i32, %c0_i32_0 : i32, i32
  }
  func.func @transform_3(%arg0: i32, %arg1: i32) -> (i32, i32, i32) {
    %c0_i32 = arith.constant 0 : i32
    %c0_i32_0 = arith.constant 0 : i32
    %c0_i32_1 = arith.constant 0 : i32
    %c0_i32_2 = arith.constant 0 : i32
    return %c0_i32, %c0_i32_0, %c0_i32_1 : i32, i32, i32
  }
  func.func @transform_4(%arg0: i32, %arg1: i32) -> (i32, i32) {
    %c0_i32 = arith.constant 0 : i32
    %c0_i32_0 = arith.constant 0 : i32
    %c0_i32_1 = arith.constant 0 : i32
    return %c0_i32, %c0_i32_0 : i32, i32
  }
  func.func @transform_5(%arg0: i32, %arg1: i32) -> (i32, i32, i32, i32) {
    %c0_i32 = arith.constant 0 : i32
    %c0_i32_0 = arith.constant 0 : i32
    %c0_i32_1 = arith.constant 0 : i32
    return %arg0, %arg1, %c0_i32, %c0_i32_0 : i32, i32, i32, i32
  }
}

</mosaic_0001>

<llo_original>
// kernel: tile.13
$region0: #{tile.13}
  #allocation0 [shape = 's32[1]{0}', space=sflag, size = 0x4, scoped, tag = 'scoped memory for tile.13']
  %s0 = inlined_call_operand.vmem [shape: f32[8], index: 0, kind: input, shape index: {}]
  %s1 = inlined_call_operand.vmem [shape: f32[16,8], index: 1, kind: output, shape index: {}]
  // Predicated region
  $region2: #{tile.13} parent=0 // pred_check
    _
  $region3: #{tile.13} parent=0 // pred_check_branch
    %3 = sbr.rel (0) target = $region5
  $region4: #{tile.13} parent=0 // pred_region
    _
  $region5: #{tile.13} parent=0 // pred_fallthru
    _
  %v4 = vld [vmem:[%s0] ss:$0 sm:$0xff]
  %5 = vst [vmem:[%s1] sm:$0xff] %v4
  %s6 = scalar_lea.vmem %s1, 8
  %7 = vst [vmem:[%s6] sm:$0xff] %v4

// kernel: tile.14
$region0: #{tile.14}
  %s0 = inlined_call_operand.vmem [shape: f32[16,8], index: 0, kind: input, shape index: {}]
  %s1 = inlined_call_operand.vmem [shape: f32[1,128], index: 1, kind: output, shape index: {}]
  $region1: #{tile.14} parent=0
    #allocation0 [shape = 'u8[4096]{0}', space=vmem, size = 0x1000, scoped, tag = 'scoped mem for output reshape']
    %v2 = vld [vmem:[%s0] sm:$0x1]
    %vm3 = vcmask 64512
    %4 = vst.msk [vmem:[#allocation0] sm:$0x1] %vm3, %v2
    %s5 = scalar_lea.vmem %s0, 15
    %v6 = vld [vmem:[%s5] sm:$0x1]
    %7 = vrot.lane.b32.xlu0 %v6, 120
    %v8 = vpop.permute.xlu0 %7
    %vm9 = vcmask 1048512
    %10 = vst.msk [vmem:[#allocation0] sm:$0x1] %vm9, %v8
    %s11 = scalar_lea.vmem %s0, 14
    %v12 = vld [vmem:[%s11] sm:$0x1]
    %13 = vrot.lane.b32.xlu0 %v12, 112
    %v14 = vpop.permute.xlu0 %13
    %vm15 = vcmask 982912
    %16 = vst.msk [vmem:[#allocation0] sm:$0x1] %vm15, %v14
    %s17 = scalar_lea.vmem %s0, 13
    %v18 = vld [vmem:[%s17] sm:$0x1]
    %19 = vrot.lane.b32.xlu0 %v18, 104
    %v20 = vpop.permute.xlu0 %19
    %vm21 = vcmask 917312
    %22 = vst.msk [vmem:[#allocation0] sm:$0x1] %vm21, %v20
    %s23 = scalar_lea.vmem %s0, 12
    %v24 = vld [vmem:[%s23] sm:$0x1]
    %25 = vrot.lane.b32.xlu0 %v24, 96
    %v26 = vpop.permute.xlu0 %25
    %vm27 = vcmask 851712
    %28 = vst.msk [vmem:[#allocation0] sm:$0x1] %vm27, %v26
    %s29 = scalar_lea.vmem %s0, 11
    %v30 = vld [vmem:[%s29] sm:$0x1]
    %31 = vrot.lane.b32.xlu0 %v30, 88
    %v32 = vpop.permute.xlu0 %31
    %vm33 = vcmask 786112
    %34 = vst.msk [vmem:[#allocation0] sm:$0x1] %vm33, %v32
    %s35 = scalar_lea.vmem %s0, 10
    %v36 = vld [vmem:[%s35] sm:$0x1]
    %37 = vrot.lane.b32.xlu0 %v36, 80
    %v38 = vpop.permute.xlu0 %37
    %vm39 = vcmask 720512
    %40 = vst.msk [vmem:[#allocation0] sm:$0x1] %vm39, %v38
    %s41 = scalar_lea.vmem %s0, 9
    %v42 = vld [vmem:[%s41] sm:$0x1]
    %43 = vrot.lane.b32.xlu0 %v42, 72
    %v44 = vpop.permute.xlu0 %43
    %vm45 = vcmask 654912
    %46 = vst.msk [vmem:[#allocation0] sm:$0x1] %vm45, %v44
    %s47 = scalar_lea.vmem %s0, 8
    %v48 = vld [vmem:[%s47] sm:$0x1]
    %49 = vrot.lane.b32.xlu0 %v48, 64
    %v50 = vpop.permute.xlu0 %49
    %vm51 = vcmask 589312
    %52 = vst.msk [vmem:[#allocation0] sm:$0x1] %vm51, %v50
    %s53 = scalar_lea.vmem %s0, 7
    %v54 = vld [vmem:[%s53] sm:$0x1]
    %55 = vrot.lane.b32.xlu0 %v54, 56
    %v56 = vpop.permute.xlu0 %55
    %vm57 = vcmask 523712
    %58 = vst.msk [vmem:[#allocation0] sm:$0x1] %vm57, %v56
    %s59 = scalar_lea.vmem %s0, 6
    %v60 = vld [vmem:[%s59] sm:$0x1]
    %61 = vrot.lane.b32.xlu0 %v60, 48
    %v62 = vpop.permute.xlu0 %61
    %vm63 = vcmask 458112
    %64 = vst.msk [vmem:[#allocation0] sm:$0x1] %vm63, %v62
    %s65 = scalar_lea.vmem %s0, 5
    %v66 = vld [vmem:[%s65] sm:$0x1]
    %67 = vrot.lane.b32.xlu0 %v66, 40
    %v68 = vpop.permute.xlu0 %67
    %vm69 = vcmask 392512
    %70 = vst.msk [vmem:[#allocation0] sm:$0x1] %vm69, %v68
    %s71 = scalar_lea.vmem %s0, 4
    %v72 = vld [vmem:[%s71] sm:$0x1]
    %73 = vrot.lane.b32.xlu0 %v72, 32
    %v74 = vpop.permute.xlu0 %73
    %vm75 = vcmask 326912
    %76 = vst.msk [vmem:[#allocation0] sm:$0x1] %vm75, %v74
    %s77 = scalar_lea.vmem %s0, 3
    %v78 = vld [vmem:[%s77] sm:$0x1]
    %79 = vrot.lane.b32.xlu0 %v78, 24
    %v80 = vpop.permute.xlu0 %79
    %vm81 = vcmask 261312
    %82 = vst.msk [vmem:[#allocation0] sm:$0x1] %vm81, %v80
    %s83 = scalar_lea.vmem %s0, 2
    %v84 = vld [vmem:[%s83] sm:$0x1]
    %85 = vrot.lane.b32.xlu0 %v84, 16
    %v86 = vpop.permute.xlu0 %85
    %vm87 = vcmask 195712
    %88 = vst.msk [vmem:[#allocation0] sm:$0x1] %vm87, %v86
    %s89 = scalar_lea.vmem %s0, 1
    %v90 = vld [vmem:[%s89] sm:$0x1]
    %91 = vrot.lane.b32.xlu0 %v90, 8
    %v92 = vpop.permute.xlu0 %91
    %vm93 = vcmask 130112
    %94 = vst.msk [vmem:[#allocation0] sm:$0x1] %vm93, %v92
    %s96 = sshllo.u32 0, 1
    %v98 = vld [vmem:[#allocation0] sm:%s96]
    %s99 = sshllo.u32 0, 1
    %100 = vst [vmem:[%s1] sm:%s99] %v98

// kernel: double_conv.1
$region0: #{double_conv.1}
  #allocation0 [shape = 'u32[]', space=smem, size = 0x4, offset = 0x4, fixed_abs, tag = 'smem constant byte address 0x4 - core index']
  #allocation1 [shape = 'u32[144,128]{1,0:T(1,128)}', space=vmem, size = 0x12000, scoped, tag = 'internal scratch']
  %s0 = inlined_call_operand.vmem [shape: bf16[2,2,12,64], index: 0, kind: input, shape index: {}]
  %s1 = inlined_call_operand.vmem [shape: bf16[3,64,128], index: 1, kind: input, shape index: {}]
  %s2 = inlined_call_operand.vmem [shape: f32[1,128], index: 2, kind: input, shape index: {}]
  %s3 = inlined_call_operand.vmem [shape: bf16[3,128,128], index: 3, kind: input, shape index: {}]
  %s4 = inlined_call_operand.vmem [shape: f32[1,128], index: 4, kind: input, shape index: {}]
  %s5 = inlined_call_operand.vmem [shape: f32[2,2,8,128], index: 5, kind: output, shape index: {}]
  %s6 = sld [smem:[#allocation0]]
  $region53: #{double_conv.1} parent=0
    _
  %s8 = ssub.s32 1, %s6
  %s9 = scalar_select 0, %s8, %s6
  loop: start=0, step=1, limit=6
  $region2: #{double_conv.1} parent=0 // loop_pre_header
    _
  $region3: #{double_conv.1} parent=0 // loop_header
    %s11 = sphi 0, %s15
    %p12 = scmp.ge.s32.totalorder %s11, 6
    %s18 = sphi 0, %s30
    %s19 = sphi 0, %s26
    %s20 = sphi 0, %s18
    %s21 = sphi 0, %s19
    %s22 = sphi 0, %s20
    %s23 = sphi 0, %s21
    %s35 = sphi 0, %s37
    %s38 = sphi 0, %s35
    %s39 = sphi 0, %s38
    %s55 = sphi 0, %s39
    %s59 = sphi 0, %s59
    %s61 = sphi 0, %s59
    %s62 = sphi 0, %s61
    %s76 = sphi 0, %s62
    %s80 = sphi 0, %s80
    %s82 = sphi 0, %s80
    %s83 = sphi 0, %s82
    %s97 = sphi 0, %s83
    %s101 = sphi 0, %s101
    %s103 = sphi 0, %s101
    %s104 = sphi 0, %s103
    %s118 = sphi 0, %s104
    %s122 = sphi 0, %s122
    %s124 = sphi 0, %s122
    %s125 = sphi 0, %s124
    %s139 = sphi 0, %s125
    %s147 = sphi 0, %s149
    %s150 = sphi 0, %s147
    %s151 = sphi 0, %s150
    %s167 = sphi 0, %s151
  $region4: #{double_conv.1} parent=0 // loop_header_branch
    %14 = sbr.rel (%p12) target = $region8
  $region5: #{double_conv.1} parent=0 // loop_body
    %s16 = ssub.s32 %s11, 1
    %s17 = ssub.s32 %s11, 2
    %s24 = sadd.s32 1, %s19
    %p25 = scmp.ge.s32.totalorder %s24, 2
    %s26 = scalar_select %p25, 0, %s24
    %s27 = sadd.s32 1, %s18
    %s28 = scalar_select %p25, %s27, %s18
    %p29 = scmp.ge.s32.totalorder %s28, 2
    %s30 = scalar_select %p29, 0, %s28
    %s31 = ssub.s32 %s18, %s30
    %s32 = ssub.s32 %s19, %s26
    %s33 = sor.u32 %s31, %s32
    %p34 = scmp.eq.s32.totalorder %s33, 0
    %s36 = sadd.s32 %s35, 1
    %s37 = scalar_select %p34, %s35, %s36
    %p40 = pneg %p34
    %p41 = scmp.eq.s32.totalorder %s11, 3
    %p42 = por %p40, %p41
    %p43 = scmp.ne.s32.totalorder %s35, %s38
    %p44 = scmp.eq.s32.totalorder %s11, 0
    %p45 = por %p43, %p44
    %p46 = scmp.ne.s32.totalorder %s35, %s38
    %p47 = scmp.eq.s32.totalorder %s16, 3
    %p48 = por %p46, %p47
    %p49 = scmp.ne.s32.totalorder %s38, %s39
    %p50 = scmp.eq.s32.totalorder %s16, 0
    %p51 = por %p49, %p50
    %p52 = scmp.ne.s32.totalorder %s38, %s39
    %p53 = scmp.eq.s32.totalorder %s17, 3
    %p54 = por %p52, %p53
    %p56 = scmp.ne.s32.totalorder %s39, %s55
    %p57 = scmp.eq.s32.totalorder %s17, 0
    %p58 = por %p56, %p57
    %s60 = sadd.s32 %s59, 1
    %p63 = scmp.eq.s32.totalorder %s11, 3
    %p64 = scmp.ne.s32.totalorder %s59, %s61
    %p65 = scmp.eq.s32.totalorder %s11, 0
    %p66 = por %p64, %p65
    %p67 = scmp.ne.s32.totalorder %s59, %s61
    %p68 = scmp.eq.s32.totalorder %s16, 3
    %p69 = por %p67, %p68
    %p70 = scmp.ne.s32.totalorder %s61, %s62
    %p71 = scmp.eq.s32.totalorder %s16, 0
    %p72 = por %p70, %p71
    %p73 = scmp.ne.s32.totalorder %s61, %s62
    %p74 = scmp.eq.s32.totalorder %s17, 3
    %p75 = por %p73, %p74
    %p77 = scmp.ne.s32.totalorder %s62, %s76
    %p78 = scmp.eq.s32.totalorder %s17, 0
    %p79 = por %p77, %p78
    %s81 = sadd.s32 %s80, 1
    %p84 = scmp.eq.s32.totalorder %s11, 3
    %p85 = scmp.ne.s32.totalorder %s80, %s82
    %p86 = scmp.eq.s32.totalorder %s11, 0
    %p87 = por %p85, %p86
    %p88 = scmp.ne.s32.totalorder %s80, %s82
    %p89 = scmp.eq.s32.totalorder %s16, 3
    %p90 = por %p88, %p89
    %p91 = scmp.ne.s32.totalorder %s82, %s83
    %p92 = scmp.eq.s32.totalorder %s16, 0
    %p93 = por %p91, %p92
    %p94 = scmp.ne.s32.totalorder %s82, %s83
    %p95 = scmp.eq.s32.totalorder %s17, 3
    %p96 = por %p94, %p95
    %p98 = scmp.ne.s32.totalorder %s83, %s97
    %p99 = scmp.eq.s32.totalorder %s17, 0
    %p100 = por %p98, %p99
    %s102 = sadd.s32 %s101, 1
    %p105 = scmp.eq.s32.totalorder %s11, 3
    %p106 = scmp.ne.s32.totalorder %s101, %s103
    %p107 = scmp.eq.s32.totalorder %s11, 0
    %p108 = por %p106, %p107
    %p109 = scmp.ne.s32.totalorder %s101, %s103
    %p110 = scmp.eq.s32.totalorder %s16, 3
    %p111 = por %p109, %p110
    %p112 = scmp.ne.s32.totalorder %s103, %s104
    %p113 = scmp.eq.s32.totalorder %s16, 0
    %p114 = por %p112, %p113
    %p115 = scmp.ne.s32.totalorder %s103, %s104
    %p116 = scmp.eq.s32.totalorder %s17, 3
    %p117 = por %p115, %p116
    %p119 = scmp.ne.s32.totalorder %s104, %s118
    %p120 = scmp.eq.s32.totalorder %s17, 0
    %p121 = por %p119, %p120
    %s123 = sadd.s32 %s122, 1
    %p126 = scmp.eq.s32.totalorder %s11, 3
    %p127 = scmp.ne.s32.totalorder %s122, %s124
    %p128 = scmp.eq.s32.totalorder %s11, 0
    %p129 = por %p127, %p128
    %p130 = scmp.ne.s32.totalorder %s122, %s124
    %p131 = scmp.eq.s32.totalorder %s16, 3
    %p132 = por %p130, %p131
    %p133 = scmp.ne.s32.totalorder %s124, %s125
    %p134 = scmp.eq.s32.totalorder %s16, 0
    %p135 = por %p133, %p134
    %p136 = scmp.ne.s32.totalorder %s124, %s125
    %p137 = scmp.eq.s32.totalorder %s17, 3
    %p138 = por %p136, %p137
    %p140 = scmp.ne.s32.totalorder %s125, %s139
    %p141 = scmp.eq.s32.totalorder %s17, 0
    %p142 = por %p140, %p141
    %s143 = ssub.s32 %s18, %s30
    %s144 = ssub.s32 %s19, %s26
    %s145 = sor.u32 %s143, %s144
    %p146 = scmp.eq.s32.totalorder %s145, 0
    %s148 = sadd.s32 %s147, 1
    %s149 = scalar_select %p146, %s147, %s148
    %p152 = pneg %p146
    %p153 = scmp.eq.s32.totalorder %s11, 3
    %p154 = por %p152, %p153
    %p155 = scmp.ne.s32.totalorder %s147, %s150
    %p156 = scmp.eq.s32.totalorder %s11, 0
    %p157 = por %p155, %p156
    %p158 = scmp.ne.s32.totalorder %s147, %s150
    %p159 = scmp.eq.s32.totalorder %s16, 3
    %p160 = por %p158, %p159
    %p161 = scmp.ne.s32.totalorder %s150, %s151
    %p162 = scmp.eq.s32.totalorder %s16, 0
    %p163 = por %p161, %p162
    %p164 = scmp.ne.s32.totalorder %s150, %s151
    %p165 = scmp.eq.s32.totalorder %s17, 3
    %p166 = por %p164, %p165
    %p168 = scmp.ne.s32.totalorder %s151, %s167
    %p169 = scmp.eq.s32.totalorder %s17, 0
    %p170 = por %p168, %p169
    %p171 = scmp.le.s32.totalorder 1, %s11
    %p172 = scmp.lt.s32.totalorder %s11, 5
    %p173 = pnand %p171, %p172
    %p174 = pneg %p173
    // Predicated region
    $region9: #{double_conv.1} parent=5 // pred_check
      _
    $region10: #{double_conv.1} parent=5 // pred_check_branch
      %176 = sbr.rel (%p173) target = $region12
    $region11: #{double_conv.1} parent=5 // pred_region
      %s177 = ssub.s32 %s11, 1
      // Predicated region
      $region13: #{double_conv.1} parent=11 // pred_check
        %p178 = pneg %p72
      $region14: #{double_conv.1} parent=11 // pred_check_branch
        %180 = sbr.rel (%p178) target = $region16
      $region15: #{double_conv.1} parent=11 // pred_region
        _
      $region16: #{double_conv.1} parent=11 // pred_fallthru
        _
      // Predicated region
      $region17: #{double_conv.1} parent=11 // pred_check
        %p181 = pneg %p93
      $region18: #{double_conv.1} parent=11 // pred_check_branch
        %183 = sbr.rel (%p181) target = $region20
      $region19: #{double_conv.1} parent=11 // pred_region
        _
      $region20: #{double_conv.1} parent=11 // pred_fallthru
        _
      // Predicated region
      $region21: #{double_conv.1} parent=11 // pred_check
        %p184 = pneg %p114
      $region22: #{double_conv.1} parent=11 // pred_check_branch
        %186 = sbr.rel (%p184) target = $region24
      $region23: #{double_conv.1} parent=11 // pred_region
        _
      $region24: #{double_conv.1} parent=11 // pred_fallthru
        _
      // Predicated region
      $region25: #{double_conv.1} parent=11 // pred_check
        %p187 = pneg %p135
      $region26: #{double_conv.1} parent=11 // pred_check_branch
        %189 = sbr.rel (%p187) target = $region28
      $region27: #{double_conv.1} parent=11 // pred_region
        _
      $region28: #{double_conv.1} parent=11 // pred_fallthru
        _
    $region12: #{double_conv.1} parent=5 // pred_fallthru
      _
    %p190 = scmp.lt.s32.totalorder %s11, 4
    // Predicated region
    $region29: #{double_conv.1} parent=5 // pred_check
      %p191 = pneg %p190
    $region30: #{double_conv.1} parent=5 // pred_check_branch
      %193 = sbr.rel (%p191) target = $region32
    $region31: #{double_conv.1} parent=5 // pred_region
      // Predicated region
      $region33: #{double_conv.1} parent=31 // pred_check
        %p194 = pneg %p45
      $region34: #{double_conv.1} parent=31 // pred_check_branch
        %196 = sbr.rel (%p194) target = $region36
      $region35: #{double_conv.1} parent=31 // pred_region
        %p197 = scmp.lt.s32.totalorder %s18, 1
        %s198 = scalar_select %p197, %s18, 1
        %p199 = scmp.lt.s32.totalorder %s19, 1
        %s200 = scalar_select %p199, %s19, 1
        %s201 = smul.addr %s200, 2
        %s202 = smul.addr %s198, 4
        %s203 = sadd.s32 %s201, %s202
        %s204 = smul.addr %s203, 4
        %s205 = scalar_lea.vmem %s0, %s204
      $region36: #{double_conv.1} parent=31 // pred_fallthru
        _
    $region32: #{double_conv.1} parent=5 // pred_fallthru
      _
    %p206 = scmp.le.s32.totalorder 1, %s11
    %p207 = scmp.lt.s32.totalorder %s11, 5
    %p208 = pnand %p206, %p207
    %p209 = pneg %p208
    // Predicated region
    $region37: #{double_conv.1} parent=5 // pred_check
      _
    $region38: #{double_conv.1} parent=5 // pred_check_branch
      %211 = sbr.rel (%p208) target = $region40
    $region39: #{double_conv.1} parent=5 // pred_region
      %s212 = ssub.s32 %s11, 1
      %p213 = scmp.lt.s32.totalorder %s20, 1
      %s214 = scalar_select %p213, %s20, 1
      %p215 = scmp.lt.s32.totalorder %s21, 1
      %s216 = scalar_select %p215, %s21, 1
      %s217 = smul.addr %s216, 2
      %s218 = smul.addr %s214, 4
      %s219 = sadd.s32 %s217, %s218
      %s220 = smul.addr %s219, 4
      %s221 = scalar_lea.vmem %s0, %s220
      %p222 = pneg %p51
      %p223 = pneg %p48
      %p224 = pneg %p72
      %p225 = pneg %p69
      %p226 = pneg %p93
      %p227 = pneg %p90
      %p228 = pneg %p114
      %p229 = pneg %p111
      %p230 = pneg %p135
      %p231 = pneg %p132
      %p232 = pneg %p163
      %p233 = pneg %p160
      %p234 = scmp.lt.s32.totalorder %s20, 1
      %s235 = scalar_select %p234, %s20, 1
      %p236 = scmp.lt.s32.totalorder %s21, 1
      %s237 = scalar_select %p236, %s21, 1
      %s238 = smul.addr %s235, 2
      %s239 = sadd.s32 %s237, %s238
      %s240 = smul.addr %s239, 8
      %s241 = scalar_lea.vmem %s5, %s240
      %p242 = scmp.lt.s32.totalorder %s20, 1
      %s243 = scalar_select %p242, %s20, 1
      %p244 = scmp.lt.s32.totalorder %s21, 1
      %s245 = scalar_select %p244, %s21, 1
      %s246 = smul.addr %s245, 2
      %s247 = smul.addr %s243, 4
      %s248 = sadd.s32 %s246, %s247
      %s249 = smul.addr %s248, 4
      %s250 = scalar_lea.vmem %s0, %s249
      %p251 = scmp.lt.s32.totalorder %s20, 1
      %s252 = scalar_select %p251, %s20, 1
      %p253 = scmp.lt.s32.totalorder %s21, 1
      %s254 = scalar_select %p253, %s21, 1
      %s255 = smul.addr %s252, 2
      %s256 = sadd.s32 %s254, %s255
      %s257 = smul.addr %s256, 8
      %s258 = scalar_lea.vmem %s5, %s257
      %v260 = vld [vmem:[%s250] sm:$0xf]
      %v261 = vld [vmem:[%s250 + $0x4] sm:$0x3]
      %v262 = vld [vmem:[%s1] sm:$0xf]
      %v263 = vld [vmem:[%s1 + $0x4] sm:$0xf]
      %v264 = vld [vmem:[%s1 + $0x8] sm:$0xf]
      %v265 = vld [vmem:[%s1 + $0xc] sm:$0xf]
      %v266 = vld [vmem:[%s1 + $0x10] sm:$0xf]
      %v267 = vld [vmem:[%s1 + $0x14] sm:$0xf]
      %v268 = vld [vmem:[%s1 + $0x18] sm:$0xf]
      %v269 = vld [vmem:[%s1 + $0x1c] sm:$0xf]
      %s270 = scalar_lea.vmem %s1, 32
      %v271 = vld [vmem:[%s270] sm:$0xf]
      %v272 = vld [vmem:[%s270 + $0x4] sm:$0xf]
      %v273 = vld [vmem:[%s270 + $0x8] sm:$0xf]
      %v274 = vld [vmem:[%s270 + $0xc] sm:$0xf]
      %v275 = vld [vmem:[%s270 + $0x10] sm:$0xf]
      %v276 = vld [vmem:[%s270 + $0x14] sm:$0xf]
      %v277 = vld [vmem:[%s270 + $0x18] sm:$0xf]
      %v278 = vld [vmem:[%s270 + $0x1c] sm:$0xf]
      %v281 = vunpack.c.l.b16 %v260
      %v282 = vunpack.c.l.b16 %v261
      %v283 = vpack.c.b16 %v282, %v281
      %v285 = vshrl.u32 %v283, 16
      %v287 = vshll.u32 %v283, 16
      %v289 = vrot.slane %v287, 1
      %v290 = vor.u32 %v285, %v289
      %v299 = vunpack.c.l.b16 %v271
      %v300 = vunpack.c.l.b16 %v272
      %v301 = vunpack.c.l.b16 %v273
      %v302 = vunpack.c.l.b16 %v274
      %v303 = vunpack.c.l.b16 %v275
      %v304 = vunpack.c.l.b16 %v276
      %v305 = vunpack.c.l.b16 %v277
      %v306 = vunpack.c.l.b16 %v278
      %v307 = vpack.c.b16 %v300, %v299
      %v308 = vpack.c.b16 %v302, %v301
      %v309 = vpack.c.b16 %v304, %v303
      %v310 = vpack.c.b16 %v306, %v305
      %vm315 = vcmask 523264
      %v317 = vsel %vm315, %v290, 0
      %319 = vmatprep.subr.bf16.mxu0 0
      %320 = vmatpush1.bf16.msra.mxu0 %v307
      %321 = vmatprep.subr.bf16.mxu0 0
      %322 = vmatpush1.bf16.msra.mxu0 %v308
      %323 = vmatprep.subr.bf16.mxu0 0
      %324 = vmatpush1.bf16.msra.mxu0 %v309
      %325 = vmatprep.subr.bf16.mxu0 0
      %326 = vmatpush1.bf16.msra.mxu0 %v310
      %327 = vmatprep.subr.bf16.mxu0 0
      %328 = vmatpush1.bf16.msra.mxu0 0
      %329 = vmatprep.subr.bf16.mxu0 0
      %330 = vmatpush1.bf16.msra.mxu0 0
      %331 = vmatprep.subr.bf16.mxu0 0
      %332 = vmatpush1.bf16.msra.mxu0 0
      %333 = vmatprep.subr.bf16.mxu0 0
      %334 = vmatpush1.bf16.msra.mxu0 0
      %335 = vmatprep.subr.bf16.mxu0 0
      %336 = vmatpush1.bf16.msra.mxu0 0
      %337 = vmatprep.subr.bf16.mxu0 0
      %338 = vmatpush1.bf16.msra.mxu0 0
      %339 = vmatprep.subr.bf16.mxu0 0
      %340 = vmatpush1.bf16.msra.mxu0 0
      %341 = vmatprep.subr.bf16.mxu0 0
      %342 = vmatpush1.bf16.msra.mxu0 0
      %343 = vmatprep.subr.bf16.mxu0 0
      %344 = vmatpush1.bf16.msra.mxu0 0
      %345 = vmatprep.subr.bf16.mxu0 0
      %346 = vmatpush1.bf16.msra.mxu0 0
      %347 = vmatprep.subr.bf16.mxu0 0
      %348 = vmatpush1.bf16.msra.mxu0 0
      %349 = vmatprep.subr.bf16.mxu0 0
      %350 = vmatpush1.bf16.msra.mxu0 0
      %351 = vmatprep.mubr.bf16.mxu0 0
      %352 = vmatmul.mubr.bf16.gmra.mrb[0].mxu0 %v317
      %v353 = vpop.f32.mrb[0].mxu0
      %v354 = vadd.f32 0.0, %v353
      %v355 = vpop.f32.mrb[0].mxu0
      %v356 = vpop.f32.mrb[0].mxu0
      %v357 = vadd.f32 0.0, %v356
      %v358 = vpop.f32.mrb[0].mxu0
      %359 = vdwg.mxu0
      %v368 = vunpack.c.l.b16 %v262
      %v369 = vunpack.c.l.b16 %v263
      %v370 = vunpack.c.l.b16 %v264
      %v371 = vunpack.c.l.b16 %v265
      %v372 = vunpack.c.l.b16 %v266
      %v373 = vunpack.c.l.b16 %v267
      %v374 = vunpack.c.l.b16 %v268
      %v375 = vunpack.c.l.b16 %v269
      %v376 = vpack.c.b16 %v369, %v368
      %v377 = vpack.c.b16 %v371, %v370
      %v378 = vpack.c.b16 %v373, %v372
      %v379 = vpack.c.b16 %v375, %v374
      %v384 = vsel %vm315, %v283, 0
      %386 = vmatprep.subr.bf16.mxu0 0
      %387 = vmatpush1.bf16.msra.mxu0 %v376
      %388 = vmatprep.subr.bf16.mxu0 0
      %389 = vmatpush1.bf16.msra.mxu0 %v377
      %390 = vmatprep.subr.bf16.mxu0 0
      %391 = vmatpush1.bf16.msra.mxu0 %v378
      %392 = vmatprep.subr.bf16.mxu0 0
      %393 = vmatpush1.bf16.msra.mxu0 %v379
      %394 = vmatprep.subr.bf16.mxu0 0
      %395 = vmatpush1.bf16.msra.mxu0 0
      %396 = vmatprep.subr.bf16.mxu0 0
      %397 = vmatpush1.bf16.msra.mxu0 0
      %398 = vmatprep.subr.bf16.mxu0 0
      %399 = vmatpush1.bf16.msra.mxu0 0
      %400 = vmatprep.subr.bf16.mxu0 0
      %401 = vmatpush1.bf16.msra.mxu0 0
      %402 = vmatprep.subr.bf16.mxu0 0
      %403 = vmatpush1.bf16.msra.mxu0 0
      %404 = vmatprep.subr.bf16.mxu0 0
      %405 = vmatpush1.bf16.msra.mxu0 0
      %406 = vmatprep.subr.bf16.mxu0 0
      %407 = vmatpush1.bf16.msra.mxu0 0
      %408 = vmatprep.subr.bf16.mxu0 0
      %409 = vmatpush1.bf16.msra.mxu0 0
      %410 = vmatprep.subr.bf16.mxu0 0
      %411 = vmatpush1.bf16.msra.mxu0 0
      %412 = vmatprep.subr.bf16.mxu0 0
      %413 = vmatpush1.bf16.msra.mxu0 0
      %414 = vmatprep.subr.bf16.mxu0 0
      %415 = vmatpush1.bf16.msra.mxu0 0
      %416 = vmatprep.subr.bf16.mxu0 0
      %417 = vmatpush1.bf16.msra.mxu0 0
      %418 = vmatprep.mubr.bf16.mxu0 0
      %419 = vmatmul.mubr.bf16.gmra.mrb[0].mxu0 %v384
      %v420 = vpop.f32.mrb[0].mxu0
      %v421 = vadd.f32 %v354, %v420
      %v422 = vpop.f32.mrb[0].mxu0
      %v423 = vpop.f32.mrb[0].mxu0
      %v424 = vadd.f32 %v357, %v423
      %v425 = vpop.f32.mrb[0].mxu0
      %426 = vdwg.mxu0
      %s427 = scalar_lea.vmem %s1, 64
      %v428 = vld [vmem:[%s427] sm:$0xf]
      %v429 = vld [vmem:[%s427 + $0x4] sm:$0xf]
      %v430 = vld [vmem:[%s427 + $0x8] sm:$0xf]
      %v431 = vld [vmem:[%s427 + $0xc] sm:$0xf]
      %v432 = vld [vmem:[%s427 + $0x10] sm:$0xf]
      %v433 = vld [vmem:[%s427 + $0x14] sm:$0xf]
      %v434 = vld [vmem:[%s427 + $0x18] sm:$0xf]
      %v435 = vld [vmem:[%s427 + $0x1c] sm:$0xf]
      %v436 = vrot.slane %v283, 1
      %v445 = vunpack.c.l.b16 %v428
      %v446 = vunpack.c.l.b16 %v429
      %v447 = vunpack.c.l.b16 %v430
      %v448 = vunpack.c.l.b16 %v431
      %v449 = vunpack.c.l.b16 %v432
      %v450 = vunpack.c.l.b16 %v433
      %v451 = vunpack.c.l.b16 %v434
      %v452 = vunpack.c.l.b16 %v435
      %v453 = vpack.c.b16 %v446, %v445
      %v454 = vpack.c.b16 %v448, %v447
      %v455 = vpack.c.b16 %v450, %v449
      %v456 = vpack.c.b16 %v452, %v451
      %v462 = vsel %vm315, %v436, 0
      %464 = vmatprep.subr.bf16.mxu0 0
      %465 = vmatpush1.bf16.msra.mxu0 %v453
      %466 = vmatprep.subr.bf16.mxu0 0
      %467 = vmatpush1.bf16.msra.mxu0 %v454
      %468 = vmatprep.subr.bf16.mxu0 0
      %469 = vmatpush1.bf16.msra.mxu0 %v455
      %470 = vmatprep.subr.bf16.mxu0 0
      %471 = vmatpush1.bf16.msra.mxu0 %v456
      %472 = vmatprep.subr.bf16.mxu0 0
      %473 = vmatpush1.bf16.msra.mxu0 0
      %474 = vmatprep.subr.bf16.mxu0 0
      %475 = vmatpush1.bf16.msra.mxu0 0
      %476 = vmatprep.subr.bf16.mxu0 0
      %477 = vmatpush1.bf16.msra.mxu0 0
      %478 = vmatprep.subr.bf16.mxu0 0
      %479 = vmatpush1.bf16.msra.mxu0 0
      %480 = vmatprep.subr.bf16.mxu0 0
      %481 = vmatpush1.bf16.msra.mxu0 0
      %482 = vmatprep.subr.bf16.mxu0 0
      %483 = vmatpush1.bf16.msra.mxu0 0
      %484 = vmatprep.subr.bf16.mxu0 0
      %485 = vmatpush1.bf16.msra.mxu0 0
      %486 = vmatprep.subr.bf16.mxu0 0
      %487 = vmatpush1.bf16.msra.mxu0 0
      %488 = vmatprep.subr.bf16.mxu0 0
      %489 = vmatpush1.bf16.msra.mxu0 0
      %490 = vmatprep.subr.bf16.mxu0 0
      %491 = vmatpush1.bf16.msra.mxu0 0
      %492 = vmatprep.subr.bf16.mxu0 0
      %493 = vmatpush1.bf16.msra.mxu0 0
      %494 = vmatprep.subr.bf16.mxu0 0
      %495 = vmatpush1.bf16.msra.mxu0 0
      %496 = vmatprep.mubr.bf16.mxu0 0
      %497 = vmatmul.mubr.bf16.gmra.mrb[0].mxu0 %v462
      %v498 = vpop.f32.mrb[0].mxu0
      %v499 = vadd.f32 0.0, %v498
      %v500 = vpop.f32.mrb[0].mxu0
      %v501 = vpop.f32.mrb[0].mxu0
      %v502 = vadd.f32 0.0, %v501
      %v503 = vpop.f32.mrb[0].mxu0
      %504 = vdwg.mxu0
      %v505 = vadd.f32 %v421, %v499
      %v506 = vadd.f32 %v424, %v502
      %v507 = vld [vmem:[%s2] sm:$0x1]
      %v509 = vlaneseq
      %v510 = vshrl.u32 %v509, 7
      %v511 = vsub.s32 0, %v510
      %v512 = vrot.slane %v507, %v511
      %v514 = vadd.f32 %v505, %v512
      %v515 = vadd.f32 %v506, %v512
      %v516 = vmax.f32 %v514, 0.0
      %v517 = vmax.f32 %v515, 0.0
      %v518 = vlaneseq
      %v519 = vshrl.u32 %v518, 7
      %v520 = vadd.s32 %v519, 8
      %s521 = smul.u32 %s21, 8
      %s522 = ssub.s32 %s521, 1
      %v523 = vstv %s522
      %v524 = vadd.s32 %v519, %v523
      %v525 = vadd.s32 %v520, %v523
      %vm526 = vcmp.ge.s32.totalorder %v524, 0
      %vm527 = vcmp.ge.s32.totalorder %v525, 0
      %vm528 = vcmp.lt.s32.totalorder %v524, 16
      %vm529 = vcmp.lt.s32.totalorder %v525, 16
      %vm530 = vmand %vm526, %vm528
      %vm531 = vmand %vm527, %vm529
      %v532 = vsel %vm530, 1, 0
      %v533 = vsel %vm531, 1, 0
      %vm534 = vcmp.eq.s32.totalorder %v532, 1
      %vm535 = vcmp.eq.s32.totalorder %v533, 1
      %v536 = vsel %vm534, %v516, 0.0
      %v537 = vsel %vm535, %v517, 0.0
      %v538 = vpack.c.bf16 %v537, %v536
      %v539 = vld [vmem:[%s3] sm:$0xf]
      %v540 = vld [vmem:[%s3 + $0x4] sm:$0xf]
      %v541 = vld [vmem:[%s3 + $0x8] sm:$0xf]
      %v542 = vld [vmem:[%s3 + $0xc] sm:$0xf]
      %v543 = vld [vmem:[%s3 + $0x10] sm:$0xf]
      %v544 = vld [vmem:[%s3 + $0x14] sm:$0xf]
      %v545 = vld [vmem:[%s3 + $0x18] sm:$0xf]
      %v546 = vld [vmem:[%s3 + $0x1c] sm:$0xf]
      %v547 = vld [vmem:[%s3 + $0x20] sm:$0xf]
      %v548 = vld [vmem:[%s3 + $0x24] sm:$0xf]
      %v549 = vld [vmem:[%s3 + $0x28] sm:$0xf]
      %v550 = vld [vmem:[%s3 + $0x2c] sm:$0xf]
      %v551 = vld [vmem:[%s3 + $0x30] sm:$0xf]
      %v552 = vld [vmem:[%s3 + $0x34] sm:$0xf]
      %v553 = vld [vmem:[%s3 + $0x38] sm:$0xf]
      %v554 = vld [vmem:[%s3 + $0x3c] sm:$0xf]
      %s555 = scalar_lea.vmem %s3, 64
      %v556 = vld [vmem:[%s555] sm:$0xf]
      %v557 = vld [vmem:[%s555 + $0x4] sm:$0xf]
      %v558 = vld [vmem:[%s555 + $0x8] sm:$0xf]
      %v559 = vld [vmem:[%s555 + $0xc] sm:$0xf]
      %v560 = vld [vmem:[%s555 + $0x10] sm:$0xf]
      %v561 = vld [vmem:[%s555 + $0x14] sm:$0xf]
      %v562 = vld [vmem:[%s555 + $0x18] sm:$0xf]
      %v563 = vld [vmem:[%s555 + $0x1c] sm:$0xf]
      %v564 = vld [vmem:[%s555 + $0x20] sm:$0xf]
      %v565 = vld [vmem:[%s555 + $0x24] sm:$0xf]
      %v566 = vld [vmem:[%s555 + $0x28] sm:$0xf]
      %v567 = vld [vmem:[%s555 + $0x2c] sm:$0xf]
      %v568 = vld [vmem:[%s555 + $0x30] sm:$0xf]
      %v569 = vld [vmem:[%s555 + $0x34] sm:$0xf]
      %v570 = vld [vmem:[%s555 + $0x38] sm:$0xf]
      %v571 = vld [vmem:[%s555 + $0x3c] sm:$0xf]
      %v573 = vshrl.u32 %v538, 16
      %v575 = vshll.u32 %v538, 16
      %v577 = vrot.slane %v575, 1
      %v578 = vor.u32 %v573, %v577
      %v596 = vunpack.c.l.b16 %v556
      %v597 = vunpack.c.l.b16 %v557
      %v598 = vunpack.c.l.b16 %v558
      %v599 = vunpack.c.l.b16 %v559
      %v600 = vunpack.c.l.b16 %v560
      %v601 = vunpack.c.l.b16 %v561
      %v602 = vunpack.c.l.b16 %v562
      %v603 = vunpack.c.l.b16 %v563
      %v604 = vunpack.c.l.b16 %v564
      %v605 = vunpack.c.l.b16 %v565
      %v606 = vunpack.c.l.b16 %v566
      %v607 = vunpack.c.l.b16 %v567
      %v608 = vunpack.c.l.b16 %v568
      %v609 = vunpack.c.l.b16 %v569
      %v610 = vunpack.c.l.b16 %v570
      %v611 = vunpack.c.l.b16 %v571
      %v612 = vpack.c.b16 %v597, %v596
      %v613 = vpack.c.b16 %v599, %v598
      %v614 = vpack.c.b16 %v601, %v600
      %v615 = vpack.c.b16 %v603, %v602
      %v616 = vpack.c.b16 %v605, %v604
      %v617 = vpack.c.b16 %v607, %v606
      %v618 = vpack.c.b16 %v609, %v608
      %v619 = vpack.c.b16 %v611, %v610
      %628 = vmatprep.subr.bf16.mxu0 0
      %629 = vmatpush1.bf16.msra.mxu0 %v612
      %630 = vmatprep.subr.bf16.mxu0 0
      %631 = vmatpush1.bf16.msra.mxu0 %v613
      %632 = vmatprep.subr.bf16.mxu0 0
      %633 = vmatpush1.bf16.msra.mxu0 %v614
      %634 = vmatprep.subr.bf16.mxu0 0
      %635 = vmatpush1.bf16.msra.mxu0 %v615
      %636 = vmatprep.subr.bf16.mxu0 0
      %637 = vmatpush1.bf16.msra.mxu0 %v616
      %638 = vmatprep.subr.bf16.mxu0 0
      %639 = vmatpush1.bf16.msra.mxu0 %v617
      %640 = vmatprep.subr.bf16.mxu0 0
      %641 = vmatpush1.bf16.msra.mxu0 %v618
      %642 = vmatprep.subr.bf16.mxu0 0
      %643 = vmatpush1.bf16.msra.mxu0 %v619
      %644 = vmatprep.subr.bf16.mxu0 0
      %645 = vmatpush1.bf16.msra.mxu0 0
      %646 = vmatprep.subr.bf16.mxu0 0
      %647 = vmatpush1.bf16.msra.mxu0 0
      %648 = vmatprep.subr.bf16.mxu0 0
      %649 = vmatpush1.bf16.msra.mxu0 0
      %650 = vmatprep.subr.bf16.mxu0 0
      %651 = vmatpush1.bf16.msra.mxu0 0
      %652 = vmatprep.subr.bf16.mxu0 0
      %653 = vmatpush1.bf16.msra.mxu0 0
      %654 = vmatprep.subr.bf16.mxu0 0
      %655 = vmatpush1.bf16.msra.mxu0 0
      %656 = vmatprep.subr.bf16.mxu0 0
      %657 = vmatpush1.bf16.msra.mxu0 0
      %658 = vmatprep.subr.bf16.mxu0 0
      %659 = vmatpush1.bf16.msra.mxu0 0
      %660 = vmatprep.mubr.bf16.mxu0 0
      %661 = vmatmul.mubr.bf16.gmra.mrb[0].mxu0 %v578
      %v662 = vpop.f32.mrb[0].mxu0
      %v663 = vadd.f32 0.0, %v662
      %v664 = vpop.f32.mrb[0].mxu0
      %v665 = vpop.f32.mrb[0].mxu0
      %v666 = vpop.f32.mrb[0].mxu0
      %667 = vdwg.mxu0
      %v684 = vunpack.c.l.b16 %v539
      %v685 = vunpack.c.l.b16 %v540
      %v686 = vunpack.c.l.b16 %v541
      %v687 = vunpack.c.l.b16 %v542
      %v688 = vunpack.c.l.b16 %v543
      %v689 = vunpack.c.l.b16 %v544
      %v690 = vunpack.c.l.b16 %v545
      %v691 = vunpack.c.l.b16 %v546
      %v692 = vunpack.c.l.b16 %v547
      %v693 = vunpack.c.l.b16 %v548
      %v694 = vunpack.c.l.b16 %v549
      %v695 = vunpack.c.l.b16 %v550
      %v696 = vunpack.c.l.b16 %v551
      %v697 = vunpack.c.l.b16 %v552
      %v698 = vunpack.c.l.b16 %v553
      %v699 = vunpack.c.l.b16 %v554
      %v700 = vpack.c.b16 %v685, %v684
      %v701 = vpack.c.b16 %v687, %v686
      %v702 = vpack.c.b16 %v689, %v688
      %v703 = vpack.c.b16 %v691, %v690
      %v704 = vpack.c.b16 %v693, %v692
      %v705 = vpack.c.b16 %v695, %v694
      %v706 = vpack.c.b16 %v697, %v696
      %v707 = vpack.c.b16 %v699, %v698
      %716 = vmatprep.subr.bf16.mxu0 0
      %717 = vmatpush1.bf16.msra.mxu0 %v700
      %718 = vmatprep.subr.bf16.mxu0 0
      %719 = vmatpush1.bf16.msra.mxu0 %v701
      %720 = vmatprep.subr.bf16.mxu0 0
      %721 = vmatpush1.bf16.msra.mxu0 %v702
      %722 = vmatprep.subr.bf16.mxu0 0
      %723 = vmatpush1.bf16.msra.mxu0 %v703
      %724 = vmatprep.subr.bf16.mxu0 0
      %725 = vmatpush1.bf16.msra.mxu0 %v704
      %726 = vmatprep.subr.bf16.mxu0 0
      %727 = vmatpush1.bf16.msra.mxu0 %v705
      %728 = vmatprep.subr.bf16.mxu0 0
      %729 = vmatpush1.bf16.msra.mxu0 %v706
      %730 = vmatprep.subr.bf16.mxu0 0
      %731 = vmatpush1.bf16.msra.mxu0 %v707
      %732 = vmatprep.subr.bf16.mxu0 0
      %733 = vmatpush1.bf16.msra.mxu0 0
      %734 = vmatprep.subr.bf16.mxu0 0
      %735 = vmatpush1.bf16.msra.mxu0 0
      %736 = vmatprep.subr.bf16.mxu0 0
      %737 = vmatpush1.bf16.msra.mxu0 0
      %738 = vmatprep.subr.bf16.mxu0 0
      %739 = vmatpush1.bf16.msra.mxu0 0
      %740 = vmatprep.subr.bf16.mxu0 0
      %741 = vmatpush1.bf16.msra.mxu0 0
      %742 = vmatprep.subr.bf16.mxu0 0
      %743 = vmatpush1.bf16.msra.mxu0 0
      %744 = vmatprep.subr.bf16.mxu0 0
      %745 = vmatpush1.bf16.msra.mxu0 0
      %746 = vmatprep.subr.bf16.mxu0 0
      %747 = vmatpush1.bf16.msra.mxu0 0
      %748 = vmatprep.mubr.bf16.mxu0 0
      %749 = vmatmul.mubr.bf16.gmra.mrb[0].mxu0 %v538
      %v750 = vpop.f32.mrb[0].mxu0
      %v751 = vadd.f32 %v663, %v750
      %v752 = vpop.f32.mrb[0].mxu0
      %v753 = vpop.f32.mrb[0].mxu0
      %v754 = vpop.f32.mrb[0].mxu0
      %755 = vdwg.mxu0
      %s756 = scalar_lea.vmem %s3, 128
      %v757 = vld [vmem:[%s756] sm:$0xf]
      %v758 = vld [vmem:[%s756 + $0x4] sm:$0xf]
      %v759 = vld [vmem:[%s756 + $0x8] sm:$0xf]
      %v760 = vld [vmem:[%s756 + $0xc] sm:$0xf]
      %v761 = vld [vmem:[%s756 + $0x10] sm:$0xf]
      %v762 = vld [vmem:[%s756 + $0x14] sm:$0xf]
      %v763 = vld [vmem:[%s756 + $0x18] sm:$0xf]
      %v764 = vld [vmem:[%s756 + $0x1c] sm:$0xf]
      %v765 = vld [vmem:[%s756 + $0x20] sm:$0xf]
      %v766 = vld [vmem:[%s756 + $0x24] sm:$0xf]
      %v767 = vld [vmem:[%s756 + $0x28] sm:$0xf]
      %v768 = vld [vmem:[%s756 + $0x2c] sm:$0xf]
      %v769 = vld [vmem:[%s756 + $0x30] sm:$0xf]
      %v770 = vld [vmem:[%s756 + $0x34] sm:$0xf]
      %v771 = vld [vmem:[%s756 + $0x38] sm:$0xf]
      %v772 = vld [vmem:[%s756 + $0x3c] sm:$0xf]
      %v774 = vrot.slane %v538, 1
      %v792 = vunpack.c.l.b16 %v757
      %v793 = vunpack.c.l.b16 %v758
      %v794 = vunpack.c.l.b16 %v759
      %v795 = vunpack.c.l.b16 %v760
      %v796 = vunpack.c.l.b16 %v761
      %v797 = vunpack.c.l.b16 %v762
      %v798 = vunpack.c.l.b16 %v763
      %v799 = vunpack.c.l.b16 %v764
      %v800 = vunpack.c.l.b16 %v765
      %v801 = vunpack.c.l.b16 %v766
      %v802 = vunpack.c.l.b16 %v767
      %v803 = vunpack.c.l.b16 %v768
      %v804 = vunpack.c.l.b16 %v769
      %v805 = vunpack.c.l.b16 %v770
      %v806 = vunpack.c.l.b16 %v771
      %v807 = vunpack.c.l.b16 %v772
      %v808 = vpack.c.b16 %v793, %v792
      %v809 = vpack.c.b16 %v795, %v794
      %v810 = vpack.c.b16 %v797, %v796
      %v811 = vpack.c.b16 %v799, %v798
      %v812 = vpack.c.b16 %v801, %v800
      %v813 = vpack.c.b16 %v803, %v802
      %v814 = vpack.c.b16 %v805, %v804
      %v815 = vpack.c.b16 %v807, %v806
      %824 = vmatprep.subr.bf16.mxu0 0
      %825 = vmatpush1.bf16.msra.mxu0 %v808
      %826 = vmatprep.subr.bf16.mxu0 0
      %827 = vmatpush1.bf16.msra.mxu0 %v809
      %828 = vmatprep.subr.bf16.mxu0 0
      %829 = vmatpush1.bf16.msra.mxu0 %v810
      %830 = vmatprep.subr.bf16.mxu0 0
      %831 = vmatpush1.bf16.msra.mxu0 %v811
      %832 = vmatprep.subr.bf16.mxu0 0
      %833 = vmatpush1.bf16.msra.mxu0 %v812
      %834 = vmatprep.subr.bf16.mxu0 0
      %835 = vmatpush1.bf16.msra.mxu0 %v813
      %836 = vmatprep.subr.bf16.mxu0 0
      %837 = vmatpush1.bf16.msra.mxu0 %v814
      %838 = vmatprep.subr.bf16.mxu0 0
      %839 = vmatpush1.bf16.msra.mxu0 %v815
      %840 = vmatprep.subr.bf16.mxu0 0
      %841 = vmatpush1.bf16.msra.mxu0 0
      %842 = vmatprep.subr.bf16.mxu0 0
      %843 = vmatpush1.bf16.msra.mxu0 0
      %844 = vmatprep.subr.bf16.mxu0 0
      %845 = vmatpush1.bf16.msra.mxu0 0
      %846 = vmatprep.subr.bf16.mxu0 0
      %847 = vmatpush1.bf16.msra.mxu0 0
      %848 = vmatprep.subr.bf16.mxu0 0
      %849 = vmatpush1.bf16.msra.mxu0 0
      %850 = vmatprep.subr.bf16.mxu0 0
      %851 = vmatpush1.bf16.msra.mxu0 0
      %852 = vmatprep.subr.bf16.mxu0 0
      %853 = vmatpush1.bf16.msra.mxu0 0
      %854 = vmatprep.subr.bf16.mxu0 0
      %855 = vmatpush1.bf16.msra.mxu0 0
      %856 = vmatprep.mubr.bf16.mxu0 0
      %857 = vmatmul.mubr.bf16.gmra.mrb[0].mxu0 %v774
      %v858 = vpop.f32.mrb[0].mxu0
      %v859 = vadd.f32 0.0, %v858
      %v860 = vpop.f32.mrb[0].mxu0
      %v861 = vpop.f32.mrb[0].mxu0
      %v862 = vpop.f32.mrb[0].mxu0
      %863 = vdwg.mxu0
      %v864 = vadd.f32 %v751, %v859
      %v865 = vld [vmem:[%s4] sm:$0x1]
      %v867 = vlaneseq
      %v868 = vshrl.u32 %v867, 7
      %v869 = vsub.s32 0, %v868
      %v870 = vrot.slane %v865, %v869
      %v872 = vadd.f32 %v864, %v870
      %v873 = vmax.f32 %v872, 0.0
      %874 = vst [vmem:[%s258] sm:$0xff] %v873
      %p875 = scmp.lt.s32.totalorder %s20, 1
      %s876 = scalar_select %p875, %s20, 1
      %p877 = scmp.lt.s32.totalorder %s21, 1
      %s878 = scalar_select %p877, %s21, 1
      %s879 = smul.addr %s876, 2
      %s880 = sadd.s32 %s878, %s879
      %s881 = smul.addr %s880, 8
      %s882 = scalar_lea.vmem %s5, %s881
      // Predicated region
      $region41: #{double_conv.1} parent=39 // pred_check
        %p883 = pneg %p160
      $region42: #{double_conv.1} parent=39 // pred_check_branch
        %885 = sbr.rel (%p883) target = $region44
      $region43: #{double_conv.1} parent=39 // pred_region
        _
      $region44: #{double_conv.1} parent=39 // pred_fallthru
        _
    $region40: #{double_conv.1} parent=5 // pred_fallthru
      _
    %p886 = scmp.le.s32.totalorder 2, %s11
    // Predicated region
    $region45: #{double_conv.1} parent=5 // pred_check
      %p887 = pneg %p886
    $region46: #{double_conv.1} parent=5 // pred_check_branch
      %889 = sbr.rel (%p887) target = $region48
    $region47: #{double_conv.1} parent=5 // pred_region
      %s890 = ssub.s32 %s11, 2
      // Predicated region
      $region49: #{double_conv.1} parent=47 // pred_check
        %p891 = pneg %p166
      $region50: #{double_conv.1} parent=47 // pred_check_branch
        %893 = sbr.rel (%p891) target = $region52
      $region51: #{double_conv.1} parent=47 // pred_region
        %p894 = scmp.lt.s32.totalorder %s22, 1
        %s895 = scalar_select %p894, %s22, 1
        %p896 = scmp.lt.s32.totalorder %s23, 1
        %s897 = scalar_select %p896, %s23, 1
        %s898 = smul.addr %s895, 2
        %s899 = sadd.s32 %s897, %s898
        %s900 = smul.addr %s899, 8
        %s901 = scalar_lea.vmem %s5, %s900
      $region52: #{double_conv.1} parent=47 // pred_fallthru
        _
    $region48: #{double_conv.1} parent=5 // pred_fallthru
      _
  $region6: #{double_conv.1} parent=0 // loop_footer
    %s15 = sadd.s32 1, %s11
  $region7: #{double_conv.1} parent=0 // loop_footer_branch
    %10 = sbr.rel target = $region3
  $region8: #{double_conv.1} parent=0 // loop_exit
    _

</llo_original>
